<compile_context>
chip_gen: v7x
topology: tpu7x:2x2x1
jax: 0.10.0
libtpu: 0.0.40
codegen_flags: <defaults>
</compile_context>

<pallas_src>
import functools

import jax
import jax.numpy as jnp
from jax.experimental import pallas as pl
from jax.experimental.pallas import tpu as pltpu

LANE = 128          # vreg lane width
BF16_SUBLANE = 16   # bf16 minimum sublane tile


def _round_up(n, m):
    return ((n + m - 1) // m) * m


# --------------------------------------------------------------------------
# Kernel: tiled affine map  out = x @ W + b,  D reduction on grid axis 1.
# --------------------------------------------------------------------------
def fused_affine_kernel(x_ref, w_ref, b_ref, o_ref, acc_ref):
    # x_ref:   [TILE_B, TILE_D]  bf16 batch x feature tile
    # w_ref:   [TILE_D, Kp]      bf16 folded ensemble weight tile
    # b_ref:   [1, Kp]           f32  folded bias (resident)
    # o_ref:   [TILE_B, Kp]      f32  lane-dense output tile (Kp % 128 == 0)
    # acc_ref: [TILE_B, Kp]      f32  VMEM accumulator (resident across k)
    k = pl.program_id(1)

    @pl.when(k == 0)
    def _init():
        acc_ref[...] = jnp.zeros_like(acc_ref)

    acc_ref[...] += jnp.dot(x_ref[...], w_ref[...],
                            preferred_element_type=jnp.float32)

    @pl.when(k == pl.num_programs(1) - 1)
    def _finalize():
        o_ref[...] = (acc_ref[...] + b_ref[...]).astype(o_ref.dtype)


# --------------------------------------------------------------------------
# One-time parameter fusion + folding (init-time, NOT per forward call).
# --------------------------------------------------------------------------
def prepare_ensemble_params(w_models, b_models, w_fc, b_fc):
    """Fuse per-model weights and fold through fc; pad to lane multiples.

    fc(cat_m(x @ W_m + b_m)) == x @ (W_all @ W_fc) + (b_all @ W_fc + b_fc)
    (exact — every sub-model is linear). Weights stored bf16 (streamed
    operand); bias stays f32 (added to the f32 accumulator).
    Returns (w_comb_pad [Dp, Kp] bf16, b_comb_pad [1, Kp] f32, num_classes).
    """
    hi = jax.lax.Precision.HIGHEST
    w_all = jnp.concatenate(w_models, axis=1)               # [D, M*K]
    b_all = jnp.concatenate(b_models, axis=0)                # [M*K]
    w_comb = jnp.dot(w_all, w_fc, precision=hi)              # [D, K]
    b_comb = jnp.dot(b_all, w_fc, precision=hi) + b_fc       # [K]

    D, K = w_comb.shape
    Dp = _round_up(D, LANE)
    Kp = _round_up(K, LANE)
    w_pad = (jnp.zeros((Dp, Kp), jnp.bfloat16)
             .at[:D, :K].set(w_comb.astype(jnp.bfloat16)))
    b_pad = jnp.zeros((1, Kp), jnp.float32).at[0, :K].set(b_comb)
    return w_pad, b_pad, K


# --------------------------------------------------------------------------
# Tiling / VMEM planning (pure Python on static shapes).
# --------------------------------------------------------------------------
def _vmem_capacity_bytes():
    try:
        return int(pltpu.get_tpu_info().vmem_capacity_bytes)
    except Exception:
        return 64 << 20   # unknown -> assume the smallest (v7x-class) VMEM


def _pipeline_vmem_bytes(tile_b, tile_d, kp):
    """Conservative footprint: every streamed spec accounted double-buffered."""
    bf16, f32 = 2, 4
    return (2 * tile_b * tile_d * bf16      # x tiles (double-buffered)
            + 2 * tile_d * kp * bf16        # weight tiles (double-buffered)
            + 2 * kp * f32                  # bias
            + 2 * tile_b * kp * f32         # output tiles (double-buffered)
            + tile_b * kp * f32)            # f32 accumulator scratch


def _divisors_desc(m):
    divs = set()
    i = 1
    while i * i <= m:
        if m % i == 0:
            divs.add(i)
            divs.add(m // i)
        i += 1
    return sorted(divs, reverse=True)


def _plan_tiles(batch, dp, kp, budget):
    """Pick (TILE_B, TILE_D).

    TILE_D always divides Dp so no garbage lanes ever enter the reduction;
    TILE_B is a multiple of 16 (bf16 sublane tile). Prefers >= 2 batch tiles
    so v7x megacore has work to shard across both TensorCores.
    """
    if batch <= BF16_SUBLANE:
        tile_b = BF16_SUBLANE
    elif batch < 1024:
        tile_b = min(512, _round_up(pl.cdiv(batch, 2), BF16_SUBLANE))
    else:
        tile_b = 512

    while True:
        for d in _divisors_desc(dp // LANE):
            tile_d = d * LANE
            if _pipeline_vmem_bytes(tile_b, tile_d, kp) <= budget:
                return tile_b, tile_d
        if tile_b <= BF16_SUBLANE:
            raise ValueError(
                "ensemble kernel does not fit the VMEM budget "
                f"({budget} bytes) even at TILE_B=16 / TILE_D=128")
        tile_b = max(BF16_SUBLANE, _round_up(tile_b // 2, BF16_SUBLANE))


# --------------------------------------------------------------------------
# Forward: flatten, (lane-pad if needed), tiled pallas_call, slice classes.
# --------------------------------------------------------------------------
@functools.partial(
    jax.jit,
    static_argnames=("num_classes", "tile_b", "tile_d", "vmem_limit"))
def _ensemble_forward(x_nchw, w_comb_pad, b_comb_pad, *, num_classes,
                      tile_b, tile_d, vmem_limit):
    B = x_nchw.shape[0]
    D = x_nchw.shape[1] * x_nchw.shape[2] * x_nchw.shape[3]
    Dp, Kp = w_comb_pad.shape

    # bf16 stream: halves the dominant HBM traffic (x tiles).
    # TODO(synk): in a real pipeline the activations would already arrive bf16.
    x_flat = x_nchw.reshape(B, D).astype(jnp.bfloat16)

    # No materialised [Bp, Dp] padded copy: lane-pad only when D % 128 != 0.
    # The batch tail is handled by partial blocks (rows beyond B are never
    # written back, so garbage rows never escape the kernel).
    if D != Dp:
        x_flat = jnp.pad(x_flat, ((0, 0), (0, Dp - D)))

    grid = (pl.cdiv(B, tile_b), Dp // tile_d)

    cost = pl.CostEstimate(
        flops=2 * B * Dp * Kp,
        transcendentals=0,
        bytes_accessed=2 * (B * Dp + Dp * Kp) + 4 * (Kp + B * Kp),
    )

    out_pad = pl.pallas_call(
        fused_affine_kernel,
        out_shape=jax.ShapeDtypeStruct((B, Kp), jnp.float32),
        grid=grid,
        in_specs=[
            pl.BlockSpec((tile_b, tile_d), lambda i, k: (i, k)),   # x
            pl.BlockSpec((tile_d, Kp), lambda i, k: (k, 0)),       # W_comb
            pl.BlockSpec((1, Kp), lambda i, k: (0, 0)),            # b_comb
        ],
        out_specs=pl.BlockSpec((tile_b, Kp), lambda i, k: (i, 0)),
        scratch_shapes=[pltpu.VMEM((tile_b, Kp), jnp.float32)],
        compiler_params=pltpu.CompilerParams(
            # Batch axis parallel (megacore sharding), D reduction arbitrary.
            # TODO(synk): evaluate pltpu.CORE_PARALLEL on the batch axis (v7x).
            dimension_semantics=("parallel", "arbitrary"),
            vmem_limit_bytes=vmem_limit,
        ),
        cost_estimate=cost,
    )(x_flat, w_comb_pad, b_comb_pad)

    # Strip class-lane padding (batch dim already exact).
    return out_pad[:, :num_classes]


def ensemble_forward(x_nchw, w_comb_pad, b_comb_pad, num_classes):
    """x_nchw: [B, C, H, W]; returns [B, num_classes]."""
    B = x_nchw.shape[0]
    Dp, Kp = w_comb_pad.shape

    # Generation-aware VMEM budget: leave headroom on v7x's 64 MiB physical
    # VMEM per TensorCore; v5e/v6e have 128 MiB so a larger limit is safe.
    phys = _vmem_capacity_bytes()
    cap = (40 << 20) if phys <= (64 << 20) else (64 << 20)
    budget = cap - (4 << 20)

    tile_b, tile_d = _plan_tiles(B, Dp, Kp, budget)
    need = _pipeline_vmem_bytes(tile_b, tile_d, Kp)
    if need > budget:   # fail loudly rather than silently clamping
        raise ValueError(f"VMEM plan ({need} B) exceeds budget ({budget} B)")
    vmem_limit = min(cap, max(need + (4 << 20), 16 << 20))
    # TODO(synk): weight/bias specs could use pipeline_mode=pl.Buffered(1)
    # when the D axis is a single tile; footprint accounted for 2 buffers here.

    return _ensemble_forward(x_nchw, w_comb_pad, b_comb_pad,
                             num_classes=num_classes, tile_b=tile_b,
                             tile_d=tile_d, vmem_limit=vmem_limit)


# --------------------------------------------------------------------------
# Pure-JAX reference mirroring the PyTorch forward (un-fused, un-folded, f32).
# --------------------------------------------------------------------------
def reference_forward(x_nchw, w_models, b_models, w_fc, b_fc):
    hi = jax.lax.Precision.HIGHEST
    B = x_nchw.shape[0]
    x_flat = x_nchw.reshape(B, -1)
    outputs = [jnp.dot(x_flat, w, precision=hi) + b[None, :]
               for w, b in zip(w_models, b_models)]
    combined = jnp.concatenate(outputs, axis=1)
    return jnp.dot(combined, w_fc, precision=hi) + b_fc[None, :]


if __name__ == "__main__":
    # Small, deterministic setup.
    B, C, H, W = 2, 4, 16, 16            # input [2, 4, 16, 16]
    num_models = 3
    num_classes = 10
    D = C * H * W                        # 1024 (lane-aligned -> zero-copy x)

    key = jax.random.PRNGKey(0)
    keys = jax.random.split(key, 2 * num_models + 3)

    x = jax.random.normal(keys[0], (B, C, H, W), dtype=jnp.float32)

    # Per sub-model linear classifier params, stored as [in, out]
    # (transposed vs torch nn.Linear's [out, in]).
    w_models = [
        jax.random.normal(keys[1 + 2 * m], (D, num_classes), jnp.float32) * 0.02
        for m in range(num_models)
    ]
    b_models = [
        jax.random.normal(keys[2 + 2 * m], (num_classes,), jnp.float32) * 0.02
        for m in range(num_models)
    ]
    # fc: Linear(num_models * num_classes, num_classes), stored as [in, out].
    w_fc = jax.random.normal(keys[-2], (num_models * num_classes, num_classes),
                             jnp.float32) * 0.1
    b_fc = jax.random.normal(keys[-1], (num_classes,), jnp.float32) * 0.1

    # Init-time fusion/folding (hoisted out of the per-call path).
    w_comb_pad, b_comb_pad, K = prepare_ensemble_params(
        w_models, b_models, w_fc, b_fc)
    w_comb_pad = jax.block_until_ready(w_comb_pad)
    b_comb_pad = jax.block_until_ready(b_comb_pad)

    out = ensemble_forward(x, w_comb_pad, b_comb_pad, num_classes=K)
    out = jax.block_until_ready(out)

    ref = reference_forward(x, w_models, b_models, w_fc, b_fc)
    assert out.shape == (B, num_classes), out.shape
    # bf16 streamed operands -> loosen tolerance vs the f32 two-stage reference.
    max_err = float(jnp.max(jnp.abs(out - ref)))
    assert jnp.allclose(out, ref, atol=3e-2, rtol=3e-2), f"max_err={max_err}"

    print("KERNEL_OK")
</pallas_src>

<mosaic_0001>
module attributes {stable_mosaic.version = 11 : i64} {
  func.func @fused_affine_kernel(%arg0: i32, %arg1: i32, %arg2: memref<16x1024xbf16, #tpu.memory_space<vmem>>, %arg3: memref<1024x128xbf16, #tpu.memory_space<vmem>>, %arg4: memref<1x128xf32, #tpu.memory_space<vmem>>, %arg5: memref<16x128xf32, #tpu.memory_space<vmem>>, %arg6: memref<16x128xf32, #tpu.memory_space<vmem>>) attributes {dimension_semantics = [#tpu.dimension_semantics<parallel>, #tpu.dimension_semantics<arbitrary>], iteration_bounds = array<i64: 1, 1>, scalar_prefetch = 0 : i64, scratch_operands = 1 : i64, tpu.core_type = #tpu.core_type<tc>, window_params = [{transform_indices = @transform_0, window_bounds = array<i64: 16, 1024>}, {transform_indices = @transform_1, window_bounds = array<i64: 1024, 128>}, {pipeline_mode = #tpu.pipeline_mode<synchronous>, transform_indices = @transform_2, window_bounds = array<i64: 1, 128>}, {transform_indices = @transform_3, window_bounds = array<i64: 16, 128>}]} {
    %c0_i32 = arith.constant 0 : i32
    %0 = arith.cmpi eq, %arg1, %c0_i32 : i32
    %1 = arith.extui %0 : i1 to i32
    %c0_i32_0 = arith.constant 0 : i32
    %2 = arith.cmpi ne, %1, %c0_i32_0 : i32
    scf.if %2 {
      %cst_10 = arith.constant 0.000000e+00 : f32
      %12 = vector.broadcast %cst_10 : f32 to vector<16x128xf32>
      %c0_11 = arith.constant 0 : index
      %c0_12 = arith.constant 0 : index
      %13 = vector.load %arg6[%c0_11, %c0_12] : memref<16x128xf32, #tpu.memory_space<vmem>>, vector<16x128xf32>
      tpu.vector_store %arg6[%c0_11, %c0_12], %12 {strides = array<i32>} : memref<16x128xf32, #tpu.memory_space<vmem>>, vector<16x128xf32>,
    } else {
    }
    %c0 = arith.constant 0 : index
    %c0_1 = arith.constant 0 : index
    %3 = vector.load %arg6[%c0, %c0_1] : memref<16x128xf32, #tpu.memory_space<vmem>>, vector<16x128xf32>
    %c0_2 = arith.constant 0 : index
    %c0_3 = arith.constant 0 : index
    %4 = vector.load %arg2[%c0_2, %c0_3] : memref<16x1024xbf16, #tpu.memory_space<vmem>>, vector<16x1024xbf16>
    %c0_4 = arith.constant 0 : index
    %c0_5 = arith.constant 0 : index
    %5 = vector.load %arg3[%c0_4, %c0_5] : memref<1024x128xbf16, #tpu.memory_space<vmem>>, vector<1024x128xbf16>
    %cst = arith.constant dense<0.000000e+00> : vector<16x128xf32>
    %6 = tpu.matmul %4, %5, %cst {dimension_numbers = #tpu.dot_dimension_numbers<[1], [0], [0], [1], [0, 0, 1, 1], [], []>} : vector<16x1024xbf16>, vector<1024x128xbf16>, vector<16x128xf32> -> vector<16x128xf32>
    %7 = arith.addf %3, %6 : vector<16x128xf32>
    %c0_6 = arith.constant 0 : index
    %c0_7 = arith.constant 0 : index
    %8 = vector.load %arg6[%c0_6, %c0_7] : memref<16x128xf32, #tpu.memory_space<vmem>>, vector<16x128xf32>
    tpu.vector_store %arg6[%c0_6, %c0_7], %7 {strides = array<i32>} : memref<16x128xf32, #tpu.memory_space<vmem>>, vector<16x128xf32>,
    %c0_i32_8 = arith.constant 0 : i32
    %9 = arith.cmpi eq, %arg1, %c0_i32_8 : i32
    %10 = arith.extui %9 : i1 to i32
    %c0_i32_9 = arith.constant 0 : i32
    %11 = arith.cmpi ne, %10, %c0_i32_9 : i32
    scf.if %11 {
      %c0_10 = arith.constant 0 : index
      %c0_11 = arith.constant 0 : index
      %12 = vector.load %arg6[%c0_10, %c0_11] : memref<16x128xf32, #tpu.memory_space<vmem>>, vector<16x128xf32>
      %c0_12 = arith.constant 0 : index
      %c0_13 = arith.constant 0 : index
      %13 = vector.load %arg4[%c0_12, %c0_13] : memref<1x128xf32, #tpu.memory_space<vmem>>, vector<1x128xf32>
      %14 = vector.broadcast %13 : vector<1x128xf32> to vector<16x128xf32>
      %15 = arith.addf %12, %14 : vector<16x128xf32>
      %c0_14 = arith.constant 0 : index
      %c0_15 = arith.constant 0 : index
      %16 = vector.load %arg5[%c0_14, %c0_15] : memref<16x128xf32, #tpu.memory_space<vmem>>, vector<16x128xf32>
      tpu.vector_store %arg5[%c0_14, %c0_15], %15 {strides = array<i32>} : memref<16x128xf32, #tpu.memory_space<vmem>>, vector<16x128xf32>,
    } else {
    }
    return
  }
  func.func @transform_0(%arg0: i32, %arg1: i32) -> (i32, i32) {
    %c0_i32 = arith.constant 0 : i32
    return %arg0, %arg1 : i32, i32
  }
  func.func @transform_1(%arg0: i32, %arg1: i32) -> (i32, i32) {
    %c0_i32 = arith.constant 0 : i32
    %c0_i32_0 = arith.constant 0 : i32
    return %arg1, %c0_i32 : i32, i32
  }
  func.func @transform_2(%arg0: i32, %arg1: i32) -> (i32, i32) {
    %c0_i32 = arith.constant 0 : i32
    %c0_i32_0 = arith.constant 0 : i32
    %c0_i32_1 = arith.constant 0 : i32
    return %c0_i32, %c0_i32_0 : i32, i32
  }
  func.func @transform_3(%arg0: i32, %arg1: i32) -> (i32, i32) {
    %c0_i32 = arith.constant 0 : i32
    %c0_i32_0 = arith.constant 0 : i32
    return %arg0, %c0_i32 : i32, i32
  }
}

</mosaic_0001>

<llo_original>
// kernel: _ensemble_forward.1
$region0: #{_ensemble_forward.1}
  #allocation0 [shape = 'u32[]', space=smem, size = 0x4, offset = 0x4, fixed_abs, tag = 'smem constant byte address 0x4 - core index']
  #allocation1 [shape = 'u32[144,128]{1,0:T(1,128)}', space=vmem, size = 0x12000, scoped, tag = 'internal scratch']
  #allocation2 [shape = 'f32[16,128]{1,0:T(8,128)}', space=vmem, size = 0x2000, scoped, tag = 'scratch operand']
  %s0 = inlined_call_operand.vmem [shape: bf16[2,1024], index: 0, kind: input, shape index: {}]
  %s1 = inlined_call_operand.hbm [shape: bf16[1024,128], index: 1, kind: input, shape index: {}]
  %s2 = inlined_call_operand.vmem [shape: f32[1,128], index: 2, kind: input, shape index: {}]
  %s3 = inlined_call_operand.hbm [shape: f32[2,128], index: 3, kind: output, shape index: {}]
  %s4 = sld [smem:[#allocation0]]
  $region34: #{_ensemble_forward.1} parent=0
    _
  %s6 = ssub.s32 1, %s4
  %s7 = scalar_select 0, %s6, %s4
  $region1: #{_ensemble_forward.1} parent=0
    #allocation3 [shape = 'u8[262144]{0}', space=vmem, size = 0x40000, scoped, tag = 'input window, operand 1, single buffered']
    #allocation4 [shape = 's32[1]{0}', space=sflag, size = 0x4, scoped, tag = 'scoped memory for _ensemble_forward.1']
    #allocation5 [shape = 's32[1]{0}', space=sflag, size = 0x4, scoped, tag = 'scoped memory for _ensemble_forward.1']
    #allocation6 [shape = 'u8[8192]{0}', space=vmem, size = 0x2000, scoped, tag = 'output window, operand 0, single buffered']
    %8 = vsyncpa [#allocation4], 0
    %9 = vsyncpa [#allocation5], 0
    // Predicated region
    $region2: #{_ensemble_forward.1} parent=1 // pred_check
      _
    $region3: #{_ensemble_forward.1} parent=1 // pred_check_branch
      %11 = sbr.rel (0) target = $region5
    $region4: #{_ensemble_forward.1} parent=1 // pred_region
      _
    $region5: #{_ensemble_forward.1} parent=1 // pred_fallthru
      _
    // Predicated region
    $region6: #{_ensemble_forward.1} parent=1 // pred_check
      _
    $region7: #{_ensemble_forward.1} parent=1 // pred_check_branch
      %13 = sbr.rel (0) target = $region9
    $region8: #{_ensemble_forward.1} parent=1 // pred_region
      %s15 = ssub.s32 8192, 8192
      %16 = vsyncadd [#allocation4], %s15
      %s17 = sshll.u32 [#allocation3], 4
      %s18 = int_to_ptr.vmem [resolvable:$true] %s17
      %23 = dma.hbm_to_vmem [thread:$0]  %s1, 8192, %s18, [#allocation4], 64, 64, 4
    $region9: #{_ensemble_forward.1} parent=1 // pred_fallthru
      _
    // Predicated region
    $region10: #{_ensemble_forward.1} parent=1 // pred_check
      _
    $region11: #{_ensemble_forward.1} parent=1 // pred_check_branch
      %25 = sbr.rel (0) target = $region13
    $region12: #{_ensemble_forward.1} parent=1 // pred_region
      _
    $region13: #{_ensemble_forward.1} parent=1 // pred_fallthru
      _
    // Predicated region
    $region14: #{_ensemble_forward.1} parent=1 // pred_check
      _
    $region15: #{_ensemble_forward.1} parent=1 // pred_check_branch
      %27 = sbr.rel (0) target = $region17
    $region16: #{_ensemble_forward.1} parent=1 // pred_region
      %28 = dma.done [#allocation4], 8192
    $region17: #{_ensemble_forward.1} parent=1 // pred_fallthru
      _
    %p30 = scmp.eq.s32.totalorder 0, 0
    // Predicated region
    $region18: #{_ensemble_forward.1} parent=1 // pred_check
      %p31 = pneg %p30
    $region19: #{_ensemble_forward.1} parent=1 // pred_check_branch
      %33 = sbr.rel (%p31) target = $region21
    $region20: #{_ensemble_forward.1} parent=1 // pred_region
      %34 = vst [vmem:[#allocation2] sm:$0xff] 0.0
      %35 = vst [vmem:[#allocation2 + $0x8] sm:$0xff] 0.0
    $region21: #{_ensemble_forward.1} parent=1 // pred_fallthru
      _
    %v36 = vld [vmem:[#allocation2] sm:$0xff]
    %v37 = vld [vmem:[#allocation2 + $0x8] sm:$0xff]
    %v38 = vld [vmem:[%s0] sm:$0xff]
    %v39 = vld [vmem:[%s0 + $0x8] sm:$0xff]
    %v40 = vld [vmem:[%s0 + $0x10] sm:$0xff]
    %v41 = vld [vmem:[%s0 + $0x18] sm:$0xff]
    %v42 = vld [vmem:[%s0 + $0x20] sm:$0xff]
    %v43 = vld [vmem:[%s0 + $0x28] sm:$0xff]
    %v44 = vld [vmem:[%s0 + $0x30] sm:$0xff]
    %v45 = vld [vmem:[%s0 + $0x38] sm:$0xff]
    %v46 = vld [vmem:[#allocation3] sm:$0xf]
    %v47 = vld [vmem:[#allocation3 + $0x4] sm:$0xf]
    %v48 = vld [vmem:[#allocation3 + $0x8] sm:$0xf]
    %v49 = vld [vmem:[#allocation3 + $0xc] sm:$0xf]
    %v50 = vld [vmem:[#allocation3 + $0x10] sm:$0xf]
    %v51 = vld [vmem:[#allocation3 + $0x14] sm:$0xf]
    %v52 = vld [vmem:[#allocation3 + $0x18] sm:$0xf]
    %v53 = vld [vmem:[#allocation3 + $0x1c] sm:$0xf]
    %v54 = vld [vmem:[#allocation3 + $0x20] sm:$0xf]
    %v55 = vld [vmem:[#allocation3 + $0x24] sm:$0xf]
    %v56 = vld [vmem:[#allocation3 + $0x28] sm:$0xf]
    %v57 = vld [vmem:[#allocation3 + $0x2c] sm:$0xf]
    %v58 = vld [vmem:[#allocation3 + $0x30] sm:$0xf]
    %v59 = vld [vmem:[#allocation3 + $0x34] sm:$0xf]
    %v60 = vld [vmem:[#allocation3 + $0x38] sm:$0xf]
    %v61 = vld [vmem:[#allocation3 + $0x3c] sm:$0xf]
    %v62 = vld [vmem:[#allocation3 + $0x40] sm:$0xf]
    %v63 = vld [vmem:[#allocation3 + $0x44] sm:$0xf]
    %v64 = vld [vmem:[#allocation3 + $0x48] sm:$0xf]
    %v65 = vld [vmem:[#allocation3 + $0x4c] sm:$0xf]
    %v66 = vld [vmem:[#allocation3 + $0x50] sm:$0xf]
    %v67 = vld [vmem:[#allocation3 + $0x54] sm:$0xf]
    %v68 = vld [vmem:[#allocation3 + $0x58] sm:$0xf]
    %v69 = vld [vmem:[#allocation3 + $0x5c] sm:$0xf]
    %v70 = vld [vmem:[#allocation3 + $0x60] sm:$0xf]
    %v71 = vld [vmem:[#allocation3 + $0x64] sm:$0xf]
    %v72 = vld [vmem:[#allocation3 + $0x68] sm:$0xf]
    %v73 = vld [vmem:[#allocation3 + $0x6c] sm:$0xf]
    %v74 = vld [vmem:[#allocation3 + $0x70] sm:$0xf]
    %v75 = vld [vmem:[#allocation3 + $0x74] sm:$0xf]
    %v76 = vld [vmem:[#allocation3 + $0x78] sm:$0xf]
    %v77 = vld [vmem:[#allocation3 + $0x7c] sm:$0xf]
    %v78 = vld [vmem:[#allocation3 + $0x80] sm:$0xf]
    %v79 = vld [vmem:[#allocation3 + $0x84] sm:$0xf]
    %v80 = vld [vmem:[#allocation3 + $0x88] sm:$0xf]
    %v81 = vld [vmem:[#allocation3 + $0x8c] sm:$0xf]
    %v82 = vld [vmem:[#allocation3 + $0x90] sm:$0xf]
    %v83 = vld [vmem:[#allocation3 + $0x94] sm:$0xf]
    %v84 = vld [vmem:[#allocation3 + $0x98] sm:$0xf]
    %v85 = vld [vmem:[#allocation3 + $0x9c] sm:$0xf]
    %v86 = vld [vmem:[#allocation3 + $0xa0] sm:$0xf]
    %v87 = vld [vmem:[#allocation3 + $0xa4] sm:$0xf]
    %v88 = vld [vmem:[#allocation3 + $0xa8] sm:$0xf]
    %v89 = vld [vmem:[#allocation3 + $0xac] sm:$0xf]
    %v90 = vld [vmem:[#allocation3 + $0xb0] sm:$0xf]
    %v91 = vld [vmem:[#allocation3 + $0xb4] sm:$0xf]
    %v92 = vld [vmem:[#allocation3 + $0xb8] sm:$0xf]
    %v93 = vld [vmem:[#allocation3 + $0xbc] sm:$0xf]
    %v94 = vld [vmem:[#allocation3 + $0xc0] sm:$0xf]
    %v95 = vld [vmem:[#allocation3 + $0xc4] sm:$0xf]
    %v96 = vld [vmem:[#allocation3 + $0xc8] sm:$0xf]
    %v97 = vld [vmem:[#allocation3 + $0xcc] sm:$0xf]
    %v98 = vld [vmem:[#allocation3 + $0xd0] sm:$0xf]
    %v99 = vld [vmem:[#allocation3 + $0xd4] sm:$0xf]
    %v100 = vld [vmem:[#allocation3 + $0xd8] sm:$0xf]
    %v101 = vld [vmem:[#allocation3 + $0xdc] sm:$0xf]
    %v102 = vld [vmem:[#allocation3 + $0xe0] sm:$0xf]
    %v103 = vld [vmem:[#allocation3 + $0xe4] sm:$0xf]
    %v104 = vld [vmem:[#allocation3 + $0xe8] sm:$0xf]
    %v105 = vld [vmem:[#allocation3 + $0xec] sm:$0xf]
    %v106 = vld [vmem:[#allocation3 + $0xf0] sm:$0xf]
    %v107 = vld [vmem:[#allocation3 + $0xf4] sm:$0xf]
    %v108 = vld [vmem:[#allocation3 + $0xf8] sm:$0xf]
    %v109 = vld [vmem:[#allocation3 + $0xfc] sm:$0xf]
    %v110 = vld [vmem:[#allocation3 + $0x100] sm:$0xf]
    %v111 = vld [vmem:[#allocation3 + $0x104] sm:$0xf]
    %v112 = vld [vmem:[#allocation3 + $0x108] sm:$0xf]
    %v113 = vld [vmem:[#allocation3 + $0x10c] sm:$0xf]
    %v114 = vld [vmem:[#allocation3 + $0x110] sm:$0xf]
    %v115 = vld [vmem:[#allocation3 + $0x114] sm:$0xf]
    %v116 = vld [vmem:[#allocation3 + $0x118] sm:$0xf]
    %v117 = vld [vmem:[#allocation3 + $0x11c] sm:$0xf]
    %v118 = vld [vmem:[#allocation3 + $0x120] sm:$0xf]
    %v119 = vld [vmem:[#allocation3 + $0x124] sm:$0xf]
    %v120 = vld [vmem:[#allocation3 + $0x128] sm:$0xf]
    %v121 = vld [vmem:[#allocation3 + $0x12c] sm:$0xf]
    %v122 = vld [vmem:[#allocation3 + $0x130] sm:$0xf]
    %v123 = vld [vmem:[#allocation3 + $0x134] sm:$0xf]
    %v124 = vld [vmem:[#allocation3 + $0x138] sm:$0xf]
    %v125 = vld [vmem:[#allocation3 + $0x13c] sm:$0xf]
    %v126 = vld [vmem:[#allocation3 + $0x140] sm:$0xf]
    %v127 = vld [vmem:[#allocation3 + $0x144] sm:$0xf]
    %v128 = vld [vmem:[#allocation3 + $0x148] sm:$0xf]
    %v129 = vld [vmem:[#allocation3 + $0x14c] sm:$0xf]
    %v130 = vld [vmem:[#allocation3 + $0x150] sm:$0xf]
    %v131 = vld [vmem:[#allocation3 + $0x154] sm:$0xf]
    %v132 = vld [vmem:[#allocation3 + $0x158] sm:$0xf]
    %v133 = vld [vmem:[#allocation3 + $0x15c] sm:$0xf]
    %v134 = vld [vmem:[#allocation3 + $0x160] sm:$0xf]
    %v135 = vld [vmem:[#allocation3 + $0x164] sm:$0xf]
    %v136 = vld [vmem:[#allocation3 + $0x168] sm:$0xf]
    %v137 = vld [vmem:[#allocation3 + $0x16c] sm:$0xf]
    %v138 = vld [vmem:[#allocation3 + $0x170] sm:$0xf]
    %v139 = vld [vmem:[#allocation3 + $0x174] sm:$0xf]
    %v140 = vld [vmem:[#allocation3 + $0x178] sm:$0xf]
    %v141 = vld [vmem:[#allocation3 + $0x17c] sm:$0xf]
    %v142 = vld [vmem:[#allocation3 + $0x180] sm:$0xf]
    %v143 = vld [vmem:[#allocation3 + $0x184] sm:$0xf]
    %v144 = vld [vmem:[#allocation3 + $0x188] sm:$0xf]
    %v145 = vld [vmem:[#allocation3 + $0x18c] sm:$0xf]
    %v146 = vld [vmem:[#allocation3 + $0x190] sm:$0xf]
    %v147 = vld [vmem:[#allocation3 + $0x194] sm:$0xf]
    %v148 = vld [vmem:[#allocation3 + $0x198] sm:$0xf]
    %v149 = vld [vmem:[#allocation3 + $0x19c] sm:$0xf]
    %v150 = vld [vmem:[#allocation3 + $0x1a0] sm:$0xf]
    %v151 = vld [vmem:[#allocation3 + $0x1a4] sm:$0xf]
    %v152 = vld [vmem:[#allocation3 + $0x1a8] sm:$0xf]
    %v153 = vld [vmem:[#allocation3 + $0x1ac] sm:$0xf]
    %v154 = vld [vmem:[#allocation3 + $0x1b0] sm:$0xf]
    %v155 = vld [vmem:[#allocation3 + $0x1b4] sm:$0xf]
    %v156 = vld [vmem:[#allocation3 + $0x1b8] sm:$0xf]
    %v157 = vld [vmem:[#allocation3 + $0x1bc] sm:$0xf]
    %v158 = vld [vmem:[#allocation3 + $0x1c0] sm:$0xf]
    %v159 = vld [vmem:[#allocation3 + $0x1c4] sm:$0xf]
    %v160 = vld [vmem:[#allocation3 + $0x1c8] sm:$0xf]
    %v161 = vld [vmem:[#allocation3 + $0x1cc] sm:$0xf]
    %v162 = vld [vmem:[#allocation3 + $0x1d0] sm:$0xf]
    %v163 = vld [vmem:[#allocation3 + $0x1d4] sm:$0xf]
    %v164 = vld [vmem:[#allocation3 + $0x1d8] sm:$0xf]
    %v165 = vld [vmem:[#allocation3 + $0x1dc] sm:$0xf]
    %v166 = vld [vmem:[#allocation3 + $0x1e0] sm:$0xf]
    %v167 = vld [vmem:[#allocation3 + $0x1e4] sm:$0xf]
    %v168 = vld [vmem:[#allocation3 + $0x1e8] sm:$0xf]
    %v169 = vld [vmem:[#allocation3 + $0x1ec] sm:$0xf]
    %v170 = vld [vmem:[#allocation3 + $0x1f0] sm:$0xf]
    %v171 = vld [vmem:[#allocation3 + $0x1f4] sm:$0xf]
    %v172 = vld [vmem:[#allocation3 + $0x1f8] sm:$0xf]
    %v173 = vld [vmem:[#allocation3 + $0x1fc] sm:$0xf]
    %v182 = vcombine.low %v38, %v39
    %v183 = vcombine.high %v38, %v39
    %v184 = vcombine.low %v40, %v41
    %v185 = vcombine.high %v40, %v41
    %v186 = vcombine.low %v42, %v43
    %v187 = vcombine.high %v42, %v43
    %v188 = vcombine.low %v44, %v45
    %v189 = vcombine.high %v44, %v45
    %v191 = vunpack.c.l.s4 1966171168
    %v192 = vunpack.c.0.s8 %v191
    %v193 = vlaneseq
    %v194 = vshrl.u32 %v193, 7
    %v195 = vsub.s32 %v192, %v194
    %v196 = vrot.slane %v182, %v195
    %v198 = vunpack.c.l.s4 1966171168
    %v199 = vunpack.c.0.s8 %v198
    %v200 = vlaneseq
    %v201 = vshrl.u32 %v200, 7
    %v202 = vsub.s32 %v199, %v201
    %v203 = vrot.slane %v183, %v202
    %v205 = vunpack.c.l.s4 1966171168
    %v206 = vunpack.c.0.s8 %v205
    %v207 = vlaneseq
    %v208 = vshrl.u32 %v207, 7
    %v209 = vsub.s32 %v206, %v208
    %v210 = vrot.slane %v184, %v209
    %v212 = vunpack.c.l.s4 1966171168
    %v213 = vunpack.c.0.s8 %v212
    %v214 = vlaneseq
    %v215 = vshrl.u32 %v214, 7
    %v216 = vsub.s32 %v213, %v215
    %v217 = vrot.slane %v185, %v216
    %v219 = vunpack.c.l.s4 1966171168
    %v220 = vunpack.c.0.s8 %v219
    %v221 = vlaneseq
    %v222 = vshrl.u32 %v221, 7
    %v223 = vsub.s32 %v220, %v222
    %v224 = vrot.slane %v186, %v223
    %v226 = vunpack.c.l.s4 1966171168
    %v227 = vunpack.c.0.s8 %v226
    %v228 = vlaneseq
    %v229 = vshrl.u32 %v228, 7
    %v230 = vsub.s32 %v227, %v229
    %v231 = vrot.slane %v187, %v230
    %v233 = vunpack.c.l.s4 1966171168
    %v234 = vunpack.c.0.s8 %v233
    %v235 = vlaneseq
    %v236 = vshrl.u32 %v235, 7
    %v237 = vsub.s32 %v234, %v236
    %v238 = vrot.slane %v188, %v237
    %v240 = vunpack.c.l.s4 1966171168
    %v241 = vunpack.c.0.s8 %v240
    %v242 = vlaneseq
    %v243 = vshrl.u32 %v242, 7
    %v244 = vsub.s32 %v241, %v243
    %v245 = vrot.slane %v189, %v244
    %v246 = vcombine.low %v196, %v210
    %v247 = vcombine.high %v196, %v210
    %v248 = vcombine.low %v203, %v217
    %v249 = vcombine.high %v203, %v217
    %v250 = vcombine.low %v224, %v238
    %v251 = vcombine.high %v224, %v238
    %v252 = vcombine.low %v231, %v245
    %v253 = vcombine.high %v231, %v245
    %v255 = vunpack.c.l.s4 1966171168
    %v256 = vunpack.c.0.s8 %v255
    %v257 = vlaneseq
    %v258 = vshrl.u32 %v257, 7
    %v259 = vsub.s32 %v256, %v258
    %v260 = vrot.slane %v246, %v259
    %v262 = vunpack.c.l.s4 1966171168
    %v263 = vunpack.c.0.s8 %v262
    %v264 = vlaneseq
    %v265 = vshrl.u32 %v264, 7
    %v266 = vsub.s32 %v263, %v265
    %v267 = vrot.slane %v248, %v266
    %v269 = vunpack.c.l.s4 1966171168
    %v270 = vunpack.c.0.s8 %v269
    %v271 = vlaneseq
    %v272 = vshrl.u32 %v271, 7
    %v273 = vsub.s32 %v270, %v272
    %v274 = vrot.slane %v247, %v273
    %v276 = vunpack.c.l.s4 1966171168
    %v277 = vunpack.c.0.s8 %v276
    %v278 = vlaneseq
    %v279 = vshrl.u32 %v278, 7
    %v280 = vsub.s32 %v277, %v279
    %v281 = vrot.slane %v249, %v280
    %v283 = vunpack.c.l.s4 1966171168
    %v284 = vunpack.c.0.s8 %v283
    %v285 = vlaneseq
    %v286 = vshrl.u32 %v285, 7
    %v287 = vsub.s32 %v284, %v286
    %v288 = vrot.slane %v250, %v287
    %v290 = vunpack.c.l.s4 1966171168
    %v291 = vunpack.c.0.s8 %v290
    %v292 = vlaneseq
    %v293 = vshrl.u32 %v292, 7
    %v294 = vsub.s32 %v291, %v293
    %v295 = vrot.slane %v252, %v294
    %v297 = vunpack.c.l.s4 1966171168
    %v298 = vunpack.c.0.s8 %v297
    %v299 = vlaneseq
    %v300 = vshrl.u32 %v299, 7
    %v301 = vsub.s32 %v298, %v300
    %v302 = vrot.slane %v251, %v301
    %v304 = vunpack.c.l.s4 1966171168
    %v305 = vunpack.c.0.s8 %v304
    %v306 = vlaneseq
    %v307 = vshrl.u32 %v306, 7
    %v308 = vsub.s32 %v305, %v307
    %v309 = vrot.slane %v253, %v308
    %v310 = vcombine.low %v260, %v288
    %v311 = vcombine.high %v260, %v288
    %v312 = vcombine.low %v267, %v295
    %v313 = vcombine.high %v267, %v295
    %v314 = vcombine.low %v274, %v302
    %v315 = vcombine.high %v274, %v302
    %v316 = vcombine.low %v281, %v309
    %v317 = vcombine.high %v281, %v309
    %v454 = vunpack.c.l.b16 %v46
    %v455 = vunpack.c.l.b16 %v47
    %v456 = vunpack.c.l.b16 %v48
    %v457 = vunpack.c.l.b16 %v49
    %v458 = vunpack.c.l.b16 %v50
    %v459 = vunpack.c.l.b16 %v51
    %v460 = vunpack.c.l.b16 %v52
    %v461 = vunpack.c.l.b16 %v53
    %v462 = vunpack.c.l.b16 %v54
    %v463 = vunpack.c.l.b16 %v55
    %v464 = vunpack.c.l.b16 %v56
    %v465 = vunpack.c.l.b16 %v57
    %v466 = vunpack.c.l.b16 %v58
    %v467 = vunpack.c.l.b16 %v59
    %v468 = vunpack.c.l.b16 %v60
    %v469 = vunpack.c.l.b16 %v61
    %v470 = vunpack.c.l.b16 %v62
    %v471 = vunpack.c.l.b16 %v63
    %v472 = vunpack.c.l.b16 %v64
    %v473 = vunpack.c.l.b16 %v65
    %v474 = vunpack.c.l.b16 %v66
    %v475 = vunpack.c.l.b16 %v67
    %v476 = vunpack.c.l.b16 %v68
    %v477 = vunpack.c.l.b16 %v69
    %v478 = vunpack.c.l.b16 %v70
    %v479 = vunpack.c.l.b16 %v71
    %v480 = vunpack.c.l.b16 %v72
    %v481 = vunpack.c.l.b16 %v73
    %v482 = vunpack.c.l.b16 %v74
    %v483 = vunpack.c.l.b16 %v75
    %v484 = vunpack.c.l.b16 %v76
    %v485 = vunpack.c.l.b16 %v77
    %v486 = vunpack.c.l.b16 %v78
    %v487 = vunpack.c.l.b16 %v79
    %v488 = vunpack.c.l.b16 %v80
    %v489 = vunpack.c.l.b16 %v81
    %v490 = vunpack.c.l.b16 %v82
    %v491 = vunpack.c.l.b16 %v83
    %v492 = vunpack.c.l.b16 %v84
    %v493 = vunpack.c.l.b16 %v85
    %v494 = vunpack.c.l.b16 %v86
    %v495 = vunpack.c.l.b16 %v87
    %v496 = vunpack.c.l.b16 %v88
    %v497 = vunpack.c.l.b16 %v89
    %v498 = vunpack.c.l.b16 %v90
    %v499 = vunpack.c.l.b16 %v91
    %v500 = vunpack.c.l.b16 %v92
    %v501 = vunpack.c.l.b16 %v93
    %v502 = vunpack.c.l.b16 %v94
    %v503 = vunpack.c.l.b16 %v95
    %v504 = vunpack.c.l.b16 %v96
    %v505 = vunpack.c.l.b16 %v97
    %v506 = vunpack.c.l.b16 %v98
    %v507 = vunpack.c.l.b16 %v99
    %v508 = vunpack.c.l.b16 %v100
    %v509 = vunpack.c.l.b16 %v101
    %v510 = vunpack.c.l.b16 %v102
    %v511 = vunpack.c.l.b16 %v103
    %v512 = vunpack.c.l.b16 %v104
    %v513 = vunpack.c.l.b16 %v105
    %v514 = vunpack.c.l.b16 %v106
    %v515 = vunpack.c.l.b16 %v107
    %v516 = vunpack.c.l.b16 %v108
    %v517 = vunpack.c.l.b16 %v109
    %v518 = vunpack.c.l.b16 %v110
    %v519 = vunpack.c.l.b16 %v111
    %v520 = vunpack.c.l.b16 %v112
    %v521 = vunpack.c.l.b16 %v113
    %v522 = vunpack.c.l.b16 %v114
    %v523 = vunpack.c.l.b16 %v115
    %v524 = vunpack.c.l.b16 %v116
    %v525 = vunpack.c.l.b16 %v117
    %v526 = vunpack.c.l.b16 %v118
    %v527 = vunpack.c.l.b16 %v119
    %v528 = vunpack.c.l.b16 %v120
    %v529 = vunpack.c.l.b16 %v121
    %v530 = vunpack.c.l.b16 %v122
    %v531 = vunpack.c.l.b16 %v123
    %v532 = vunpack.c.l.b16 %v124
    %v533 = vunpack.c.l.b16 %v125
    %v534 = vunpack.c.l.b16 %v126
    %v535 = vunpack.c.l.b16 %v127
    %v536 = vunpack.c.l.b16 %v128
    %v537 = vunpack.c.l.b16 %v129
    %v538 = vunpack.c.l.b16 %v130
    %v539 = vunpack.c.l.b16 %v131
    %v540 = vunpack.c.l.b16 %v132
    %v541 = vunpack.c.l.b16 %v133
    %v542 = vunpack.c.l.b16 %v134
    %v543 = vunpack.c.l.b16 %v135
    %v544 = vunpack.c.l.b16 %v136
    %v545 = vunpack.c.l.b16 %v137
    %v546 = vunpack.c.l.b16 %v138
    %v547 = vunpack.c.l.b16 %v139
    %v548 = vunpack.c.l.b16 %v140
    %v549 = vunpack.c.l.b16 %v141
    %v550 = vunpack.c.l.b16 %v142
    %v551 = vunpack.c.l.b16 %v143
    %v552 = vunpack.c.l.b16 %v144
    %v553 = vunpack.c.l.b16 %v145
    %v554 = vunpack.c.l.b16 %v146
    %v555 = vunpack.c.l.b16 %v147
    %v556 = vunpack.c.l.b16 %v148
    %v557 = vunpack.c.l.b16 %v149
    %v558 = vunpack.c.l.b16 %v150
    %v559 = vunpack.c.l.b16 %v151
    %v560 = vunpack.c.l.b16 %v152
    %v561 = vunpack.c.l.b16 %v153
    %v562 = vunpack.c.l.b16 %v154
    %v563 = vunpack.c.l.b16 %v155
    %v564 = vunpack.c.l.b16 %v156
    %v565 = vunpack.c.l.b16 %v157
    %v566 = vunpack.c.l.b16 %v158
    %v567 = vunpack.c.l.b16 %v159
    %v568 = vunpack.c.l.b16 %v160
    %v569 = vunpack.c.l.b16 %v161
    %v570 = vunpack.c.l.b16 %v162
    %v571 = vunpack.c.l.b16 %v163
    %v572 = vunpack.c.l.b16 %v164
    %v573 = vunpack.c.l.b16 %v165
    %v574 = vunpack.c.l.b16 %v166
    %v575 = vunpack.c.l.b16 %v167
    %v576 = vunpack.c.l.b16 %v168
    %v577 = vunpack.c.l.b16 %v169
    %v578 = vunpack.c.l.b16 %v170
    %v579 = vunpack.c.l.b16 %v171
    %v580 = vunpack.c.l.b16 %v172
    %v581 = vunpack.c.l.b16 %v173
    %v582 = vpack.c.b16 %v455, %v454
    %v583 = vpack.c.b16 %v457, %v456
    %v584 = vpack.c.b16 %v459, %v458
    %v585 = vpack.c.b16 %v461, %v460
    %v586 = vpack.c.b16 %v463, %v462
    %v587 = vpack.c.b16 %v465, %v464
    %v588 = vpack.c.b16 %v467, %v466
    %v589 = vpack.c.b16 %v469, %v468
    %v590 = vpack.c.b16 %v471, %v470
    %v591 = vpack.c.b16 %v473, %v472
    %v592 = vpack.c.b16 %v475, %v474
    %v593 = vpack.c.b16 %v477, %v476
    %v594 = vpack.c.b16 %v479, %v478
    %v595 = vpack.c.b16 %v481, %v480
    %v596 = vpack.c.b16 %v483, %v482
    %v597 = vpack.c.b16 %v485, %v484
    %v598 = vpack.c.b16 %v487, %v486
    %v599 = vpack.c.b16 %v489, %v488
    %v600 = vpack.c.b16 %v491, %v490
    %v601 = vpack.c.b16 %v493, %v492
    %v602 = vpack.c.b16 %v495, %v494
    %v603 = vpack.c.b16 %v497, %v496
    %v604 = vpack.c.b16 %v499, %v498
    %v605 = vpack.c.b16 %v501, %v500
    %v606 = vpack.c.b16 %v503, %v502
    %v607 = vpack.c.b16 %v505, %v504
    %v608 = vpack.c.b16 %v507, %v506
    %v609 = vpack.c.b16 %v509, %v508
    %v610 = vpack.c.b16 %v511, %v510
    %v611 = vpack.c.b16 %v513, %v512
    %v612 = vpack.c.b16 %v515, %v514
    %v613 = vpack.c.b16 %v517, %v516
    %v614 = vpack.c.b16 %v519, %v518
    %v615 = vpack.c.b16 %v521, %v520
    %v616 = vpack.c.b16 %v523, %v522
    %v617 = vpack.c.b16 %v525, %v524
    %v618 = vpack.c.b16 %v527, %v526
    %v619 = vpack.c.b16 %v529, %v528
    %v620 = vpack.c.b16 %v531, %v530
    %v621 = vpack.c.b16 %v533, %v532
    %v622 = vpack.c.b16 %v535, %v534
    %v623 = vpack.c.b16 %v537, %v536
    %v624 = vpack.c.b16 %v539, %v538
    %v625 = vpack.c.b16 %v541, %v540
    %v626 = vpack.c.b16 %v543, %v542
    %v627 = vpack.c.b16 %v545, %v544
    %v628 = vpack.c.b16 %v547, %v546
    %v629 = vpack.c.b16 %v549, %v548
    %v630 = vpack.c.b16 %v551, %v550
    %v631 = vpack.c.b16 %v553, %v552
    %v632 = vpack.c.b16 %v555, %v554
    %v633 = vpack.c.b16 %v557, %v556
    %v634 = vpack.c.b16 %v559, %v558
    %v635 = vpack.c.b16 %v561, %v560
    %v636 = vpack.c.b16 %v563, %v562
    %v637 = vpack.c.b16 %v565, %v564
    %v638 = vpack.c.b16 %v567, %v566
    %v639 = vpack.c.b16 %v569, %v568
    %v640 = vpack.c.b16 %v571, %v570
    %v641 = vpack.c.b16 %v573, %v572
    %v642 = vpack.c.b16 %v575, %v574
    %v643 = vpack.c.b16 %v577, %v576
    %v644 = vpack.c.b16 %v579, %v578
    %v645 = vpack.c.b16 %v581, %v580
    %710 = vmatprep.subr.bf16.mxu0 0
    %711 = vmatpush1.bf16.msra.mxu0 %v582
    %712 = vmatprep.subr.bf16.mxu0 0
    %713 = vmatpush1.bf16.msra.mxu0 %v583
    %714 = vmatprep.subr.bf16.mxu0 0
    %715 = vmatpush1.bf16.msra.mxu0 %v584
    %716 = vmatprep.subr.bf16.mxu0 0
    %717 = vmatpush1.bf16.msra.mxu0 %v585
    %718 = vmatprep.subr.bf16.mxu0 0
    %719 = vmatpush1.bf16.msra.mxu0 %v586
    %720 = vmatprep.subr.bf16.mxu0 0
    %721 = vmatpush1.bf16.msra.mxu0 %v587
    %722 = vmatprep.subr.bf16.mxu0 0
    %723 = vmatpush1.bf16.msra.mxu0 %v588
    %724 = vmatprep.subr.bf16.mxu0 0
    %725 = vmatpush1.bf16.msra.mxu0 %v589
    %726 = vmatprep.subr.bf16.mxu0 0
    %727 = vmatpush1.bf16.msra.mxu0 %v590
    %728 = vmatprep.subr.bf16.mxu0 0
    %729 = vmatpush1.bf16.msra.mxu0 %v591
    %730 = vmatprep.subr.bf16.mxu0 0
    %731 = vmatpush1.bf16.msra.mxu0 %v592
    %732 = vmatprep.subr.bf16.mxu0 0
    %733 = vmatpush1.bf16.msra.mxu0 %v593
    %734 = vmatprep.subr.bf16.mxu0 0
    %735 = vmatpush1.bf16.msra.mxu0 %v594
    %736 = vmatprep.subr.bf16.mxu0 0
    %737 = vmatpush1.bf16.msra.mxu0 %v595
    %738 = vmatprep.subr.bf16.mxu0 0
    %739 = vmatpush1.bf16.msra.mxu0 %v596
    %740 = vmatprep.subr.bf16.mxu0 0
    %741 = vmatpush1.bf16.msra.mxu0 %v597
    %742 = vmatprep.mubr.bf16.mxu0 %v314
    %743 = vmatmul.mubr.bf16.gmra.mrb[0].mxu0 %v310
    %v744 = vpop.f32.mrb[0].mxu0
    %v745 = vadd.f32 0.0, %v744
    %v746 = vpop.f32.mrb[0].mxu0
    %v747 = vpop.f32.mrb[0].mxu0
    %v748 = vadd.f32 0.0, %v747
    %v749 = vpop.f32.mrb[0].mxu0
    %750 = vdwg.mxu0
    %751 = vmatprep.subr.bf16.mxu0 0
    %752 = vmatpush1.bf16.msra.mxu0 %v598
    %753 = vmatprep.subr.bf16.mxu0 0
    %754 = vmatpush1.bf16.msra.mxu0 %v599
    %755 = vmatprep.subr.bf16.mxu0 0
    %756 = vmatpush1.bf16.msra.mxu0 %v600
    %757 = vmatprep.subr.bf16.mxu0 0
    %758 = vmatpush1.bf16.msra.mxu0 %v601
    %759 = vmatprep.subr.bf16.mxu0 0
    %760 = vmatpush1.bf16.msra.mxu0 %v602
    %761 = vmatprep.subr.bf16.mxu0 0
    %762 = vmatpush1.bf16.msra.mxu0 %v603
    %763 = vmatprep.subr.bf16.mxu0 0
    %764 = vmatpush1.bf16.msra.mxu0 %v604
    %765 = vmatprep.subr.bf16.mxu0 0
    %766 = vmatpush1.bf16.msra.mxu0 %v605
    %767 = vmatprep.subr.bf16.mxu0 0
    %768 = vmatpush1.bf16.msra.mxu0 %v606
    %769 = vmatprep.subr.bf16.mxu0 0
    %770 = vmatpush1.bf16.msra.mxu0 %v607
    %771 = vmatprep.subr.bf16.mxu0 0
    %772 = vmatpush1.bf16.msra.mxu0 %v608
    %773 = vmatprep.subr.bf16.mxu0 0
    %774 = vmatpush1.bf16.msra.mxu0 %v609
    %775 = vmatprep.subr.bf16.mxu0 0
    %776 = vmatpush1.bf16.msra.mxu0 %v610
    %777 = vmatprep.subr.bf16.mxu0 0
    %778 = vmatpush1.bf16.msra.mxu0 %v611
    %779 = vmatprep.subr.bf16.mxu0 0
    %780 = vmatpush1.bf16.msra.mxu0 %v612
    %781 = vmatprep.subr.bf16.mxu0 0
    %782 = vmatpush1.bf16.msra.mxu0 %v613
    %783 = vmatprep.mubr.bf16.mxu0 %v315
    %784 = vmatmul.mubr.bf16.gmra.mrb[0].mxu0 %v311
    %v785 = vpop.f32.mrb[0].mxu0
    %v786 = vadd.f32 %v745, %v785
    %v787 = vpop.f32.mrb[0].mxu0
    %v788 = vpop.f32.mrb[0].mxu0
    %v789 = vadd.f32 %v748, %v788
    %v790 = vpop.f32.mrb[0].mxu0
    %791 = vdwg.mxu0
    %792 = vmatprep.subr.bf16.mxu0 0
    %793 = vmatpush1.bf16.msra.mxu0 %v614
    %794 = vmatprep.subr.bf16.mxu0 0
    %795 = vmatpush1.bf16.msra.mxu0 %v615
    %796 = vmatprep.subr.bf16.mxu0 0
    %797 = vmatpush1.bf16.msra.mxu0 %v616
    %798 = vmatprep.subr.bf16.mxu0 0
    %799 = vmatpush1.bf16.msra.mxu0 %v617
    %800 = vmatprep.subr.bf16.mxu0 0
    %801 = vmatpush1.bf16.msra.mxu0 %v618
    %802 = vmatprep.subr.bf16.mxu0 0
    %803 = vmatpush1.bf16.msra.mxu0 %v619
    %804 = vmatprep.subr.bf16.mxu0 0
    %805 = vmatpush1.bf16.msra.mxu0 %v620
    %806 = vmatprep.subr.bf16.mxu0 0
    %807 = vmatpush1.bf16.msra.mxu0 %v621
    %808 = vmatprep.subr.bf16.mxu0 0
    %809 = vmatpush1.bf16.msra.mxu0 %v622
    %810 = vmatprep.subr.bf16.mxu0 0
    %811 = vmatpush1.bf16.msra.mxu0 %v623
    %812 = vmatprep.subr.bf16.mxu0 0
    %813 = vmatpush1.bf16.msra.mxu0 %v624
    %814 = vmatprep.subr.bf16.mxu0 0
    %815 = vmatpush1.bf16.msra.mxu0 %v625
    %816 = vmatprep.subr.bf16.mxu0 0
    %817 = vmatpush1.bf16.msra.mxu0 %v626
    %818 = vmatprep.subr.bf16.mxu0 0
    %819 = vmatpush1.bf16.msra.mxu0 %v627
    %820 = vmatprep.subr.bf16.mxu0 0
    %821 = vmatpush1.bf16.msra.mxu0 %v628
    %822 = vmatprep.subr.bf16.mxu0 0
    %823 = vmatpush1.bf16.msra.mxu0 %v629
    %824 = vmatprep.mubr.bf16.mxu0 %v316
    %825 = vmatmul.mubr.bf16.gmra.mrb[0].mxu0 %v312
    %v826 = vpop.f32.mrb[0].mxu0
    %v827 = vadd.f32 %v786, %v826
    %v828 = vpop.f32.mrb[0].mxu0
    %v829 = vpop.f32.mrb[0].mxu0
    %v830 = vadd.f32 %v789, %v829
    %v831 = vpop.f32.mrb[0].mxu0
    %832 = vdwg.mxu0
    %833 = vmatprep.subr.bf16.mxu0 0
    %834 = vmatpush1.bf16.msra.mxu0 %v630
    %835 = vmatprep.subr.bf16.mxu0 0
    %836 = vmatpush1.bf16.msra.mxu0 %v631
    %837 = vmatprep.subr.bf16.mxu0 0
    %838 = vmatpush1.bf16.msra.mxu0 %v632
    %839 = vmatprep.subr.bf16.mxu0 0
    %840 = vmatpush1.bf16.msra.mxu0 %v633
    %841 = vmatprep.subr.bf16.mxu0 0
    %842 = vmatpush1.bf16.msra.mxu0 %v634
    %843 = vmatprep.subr.bf16.mxu0 0
    %844 = vmatpush1.bf16.msra.mxu0 %v635
    %845 = vmatprep.subr.bf16.mxu0 0
    %846 = vmatpush1.bf16.msra.mxu0 %v636
    %847 = vmatprep.subr.bf16.mxu0 0
    %848 = vmatpush1.bf16.msra.mxu0 %v637
    %849 = vmatprep.subr.bf16.mxu0 0
    %850 = vmatpush1.bf16.msra.mxu0 %v638
    %851 = vmatprep.subr.bf16.mxu0 0
    %852 = vmatpush1.bf16.msra.mxu0 %v639
    %853 = vmatprep.subr.bf16.mxu0 0
    %854 = vmatpush1.bf16.msra.mxu0 %v640
    %855 = vmatprep.subr.bf16.mxu0 0
    %856 = vmatpush1.bf16.msra.mxu0 %v641
    %857 = vmatprep.subr.bf16.mxu0 0
    %858 = vmatpush1.bf16.msra.mxu0 %v642
    %859 = vmatprep.subr.bf16.mxu0 0
    %860 = vmatpush1.bf16.msra.mxu0 %v643
    %861 = vmatprep.subr.bf16.mxu0 0
    %862 = vmatpush1.bf16.msra.mxu0 %v644
    %863 = vmatprep.subr.bf16.mxu0 0
    %864 = vmatpush1.bf16.msra.mxu0 %v645
    %865 = vmatprep.mubr.bf16.mxu0 %v317
    %866 = vmatmul.mubr.bf16.gmra.mrb[0].mxu0 %v313
    %v867 = vpop.f32.mrb[0].mxu0
    %v868 = vadd.f32 %v827, %v867
    %v869 = vpop.f32.mrb[0].mxu0
    %v870 = vpop.f32.mrb[0].mxu0
    %v871 = vadd.f32 %v830, %v870
    %v872 = vpop.f32.mrb[0].mxu0
    %873 = vdwg.mxu0
    %v874 = vadd.f32 %v36, %v868
    %v875 = vadd.f32 %v37, %v871
    %876 = vst [vmem:[#allocation2] sm:$0xff] %v874
    %877 = vst [vmem:[#allocation2 + $0x8] sm:$0xff] %v875
    // Predicated region
    $region22: #{_ensemble_forward.1} parent=1 // pred_check
      %p878 = pneg %p30
    $region23: #{_ensemble_forward.1} parent=1 // pred_check_branch
      %880 = sbr.rel (%p878) target = $region25
    $region24: #{_ensemble_forward.1} parent=1 // pred_region
      %v881 = vld [vmem:[#allocation2] sm:$0xff]
      %v882 = vld [vmem:[#allocation2 + $0x8] sm:$0xff]
      %v883 = vld [vmem:[%s2] sm:$0x1]
      %v885 = vlaneseq
      %v886 = vshrl.u32 %v885, 7
      %v887 = vsub.s32 0, %v886
      %v888 = vrot.slane %v883, %v887
      %v890 = vadd.f32 %v881, %v888
      %v891 = vadd.f32 %v882, %v888
      %892 = vst [vmem:[#allocation6] sm:$0xff] %v890
      %893 = vst [vmem:[#allocation6 + $0x8] sm:$0xff] %v891
    $region25: #{_ensemble_forward.1} parent=1 // pred_fallthru
      _
    // Predicated region
    $region26: #{_ensemble_forward.1} parent=1 // pred_check
      _
    $region27: #{_ensemble_forward.1} parent=1 // pred_check_branch
      %895 = sbr.rel (0) target = $region29
    $region28: #{_ensemble_forward.1} parent=1 // pred_region
      %s897 = ssub.s32 256, 32
      %898 = vsyncadd [#allocation5], %s897
      %s899 = sshll.u32 [#allocation6], 4
      %s900 = int_to_ptr.vmem [resolvable:$true] %s899
      %905 = dma.vmem_to_hbm [thread:$0]  %s900, 32, %s3, [#allocation5], 32, 32, 2
    $region29: #{_ensemble_forward.1} parent=1 // pred_fallthru
      _
    // Predicated region
    $region30: #{_ensemble_forward.1} parent=1 // pred_check
      _
    $region31: #{_ensemble_forward.1} parent=1 // pred_check_branch
      %907 = sbr.rel (0) target = $region33
    $region32: #{_ensemble_forward.1} parent=1 // pred_region
      %908 = dma.done [#allocation5], 256
    $region33: #{_ensemble_forward.1} parent=1 // pred_fallthru
      _
    %909 = vsyncpa [#allocation4], 1
    %910 = vsyncpa [#allocation5], 1

</llo_original>
